<compile_context>
chip_gen: v7x
topology: tpu7x:2x2x1
jax: 0.10.0
libtpu: 0.0.40
codegen_flags: <defaults>
</compile_context>

<pallas_src>
import jax
import jax.numpy as jnp
from jax import lax
from jax.experimental import pallas as pl
from jax.experimental.pallas import tpu as pltpu

BN_EPS = 1e-5


def lr_kernel(x_ref, gamma_ref, beta_ref, w_ref, bias_ref, o_ref):
    inv_n = 1.0 / x_ref.shape[0]

    # ReLU (f32 on the VPU).
    x = jnp.maximum(x_ref[...], 0.0)                         # (N, D)

    # BatchNorm1d training-mode statistics.  Two *independent* sublane
    # reductions (sum, sum-of-squares) issued back-to-back, then
    # var = E[x^2] - mean^2 (biased, as PyTorch uses for normalization).
    s1 = jnp.sum(x, axis=0, keepdims=True)                   # (1, D)
    s2 = jnp.sum(x * x, axis=0, keepdims=True)               # (1, D)
    mean = s1 * inv_n                                        # (1, D)
    ex2 = s2 * inv_n                                         # (1, D)
    var = jnp.maximum(ex2 - mean * mean, 0.0)                # guard cancellation
    inv_std = lax.rsqrt(var + BN_EPS)                        # EUP

    # Fold the BN affine into one per-feature scale/shift (in-kernel).
    scale = gamma_ref[...] * inv_std                         # (1, D)
    shift = beta_ref[...] - mean * scale                     # (1, D)
    y = x * scale + shift                                    # (N, D)

    # Linear: y @ W^T + b.  Full f32 operands on the MXU, f32 accumulation.
    out = lax.dot_general(
        y, w_ref[...],
        dimension_numbers=(((1,), (1,)), ((), ())),          # contract D with D
        preferred_element_type=jnp.float32)                  # (N, O)
    o_ref[...] = out + bias_ref[...]


def lr_forward(x, gamma, beta, weight, bias):
    """x: (N, D); gamma/beta: (D,); weight: (out_dim, D); bias: (out_dim,)."""
    n, d = x.shape
    out_dim = weight.shape[0]

    vmem = pl.BlockSpec(memory_space=pltpu.VMEM)             # whole-array block
    return pl.pallas_call(
        lr_kernel,
        out_shape=jax.ShapeDtypeStruct((n, out_dim), jnp.float32),
        in_specs=[vmem, vmem, vmem, vmem, vmem],
        out_specs=vmem,
    )(
        x.astype(jnp.float32),                               # no-op if already f32
        gamma.astype(jnp.float32).reshape(1, d),             # metadata-only reshape
        beta.astype(jnp.float32).reshape(1, d),
        weight.astype(jnp.float32),                          # (O, D), transposed-contract in kernel
        bias.astype(jnp.float32).reshape(1, out_dim),
    )


def lr_reference(x, gamma, beta, weight, bias):
    """Pure-f32 reference matching the PyTorch module (training-mode BN)."""
    x = jnp.maximum(x, 0.0)
    mean = jnp.mean(x, axis=0, keepdims=True)
    var = jnp.mean((x - mean) ** 2, axis=0, keepdims=True)
    x_hat = (x - mean) / jnp.sqrt(var + BN_EPS)
    y = x_hat * gamma[None, :] + beta[None, :]
    return y @ weight.T + bias[None, :]


if __name__ == "__main__":
    # Small shapes consistent with the module: batch=8, in_dim=32, out_dim=16.
    N, IN_DIM, OUT_DIM = 8, 32, 16

    key = jax.random.PRNGKey(0)
    kx, kw, kb = jax.random.split(key, 3)

    x = jax.random.normal(kx, (N, IN_DIM), dtype=jnp.float32)

    # Deterministic parameter init (BatchNorm1d default: gamma=1, beta=0).
    gamma = jnp.ones((IN_DIM,), dtype=jnp.float32)
    beta = jnp.zeros((IN_DIM,), dtype=jnp.float32)
    # Linear params: uniform(-1/sqrt(in_dim), 1/sqrt(in_dim)) like PyTorch.
    bound = 1.0 / (IN_DIM ** 0.5)
    weight = jax.random.uniform(kw, (OUT_DIM, IN_DIM), jnp.float32, -bound, bound)
    bias = jax.random.uniform(kb, (OUT_DIM,), jnp.float32, -bound, bound)

    out = lr_forward(x, gamma, beta, weight, bias)
    out = jax.block_until_ready(out)

    ref = lr_reference(x, gamma, beta, weight, bias)
    assert out.shape == (N, OUT_DIM), out.shape
    # Full-f32 path: only reassociation (E[x^2]-mean^2 vs two-pass) differences.
    assert jnp.allclose(out, ref, atol=1e-4, rtol=1e-4), \
        f"max abs err {jnp.max(jnp.abs(out - ref))}"

    print("KERNEL_OK")
</pallas_src>

<mosaic_0001>
module attributes {stable_mosaic.version = 11 : i64} {
  func.func @lr_kernel(%arg0: memref<8x32xf32, #tpu.memory_space<vmem>>, %arg1: memref<1x32xf32, #tpu.memory_space<vmem>>, %arg2: memref<1x32xf32, #tpu.memory_space<vmem>>, %arg3: memref<16x32xf32, #tpu.memory_space<vmem>>, %arg4: memref<1x16xf32, #tpu.memory_space<vmem>>, %arg5: memref<8x16xf32, #tpu.memory_space<vmem>>) attributes {dimension_semantics = [], scalar_prefetch = 0 : i64, scratch_operands = 0 : i64, tpu.core_type = #tpu.core_type<tc>} {
    %c0 = arith.constant 0 : index
    %c0_0 = arith.constant 0 : index
    %0 = vector.load %arg0[%c0, %c0_0] : memref<8x32xf32, #tpu.memory_space<vmem>>, vector<8x32xf32>
    %cst = arith.constant 0.000000e+00 : f32
    %1 = vector.broadcast %cst : f32 to vector<8x32xf32>
    %2 = arith.maximumf %0, %1 : vector<8x32xf32>
    %cst_1 = arith.constant dense<0.000000e+00> : vector<32xf32>
    %3 = vector.multi_reduction <add>, %2, %cst_1 [0] : vector<8x32xf32> to vector<32xf32>
    %4 = vector.shape_cast %3 : vector<32xf32> to vector<1x32xf32>
    %5 = arith.mulf %2, %2 : vector<8x32xf32>
    %cst_2 = arith.constant dense<0.000000e+00> : vector<32xf32>
    %6 = vector.multi_reduction <add>, %5, %cst_2 [0] : vector<8x32xf32> to vector<32xf32>
    %7 = vector.shape_cast %6 : vector<32xf32> to vector<1x32xf32>
    %cst_3 = arith.constant 1.250000e-01 : f32
    %8 = vector.broadcast %cst_3 : f32 to vector<1x32xf32>
    %9 = arith.mulf %4, %8 : vector<1x32xf32>
    %cst_4 = arith.constant 1.250000e-01 : f32
    %10 = vector.broadcast %cst_4 : f32 to vector<1x32xf32>
    %11 = arith.mulf %7, %10 : vector<1x32xf32>
    %12 = arith.mulf %9, %9 : vector<1x32xf32>
    %13 = arith.subf %11, %12 : vector<1x32xf32>
    %cst_5 = arith.constant 0.000000e+00 : f32
    %14 = vector.broadcast %cst_5 : f32 to vector<1x32xf32>
    %15 = arith.maximumf %13, %14 : vector<1x32xf32>
    %cst_6 = arith.constant 9.99999974E-6 : f32
    %16 = vector.broadcast %cst_6 : f32 to vector<1x32xf32>
    %17 = arith.addf %15, %16 : vector<1x32xf32>
    %18 = math.rsqrt %17 : vector<1x32xf32>
    %c0_7 = arith.constant 0 : index
    %c0_8 = arith.constant 0 : index
    %19 = vector.load %arg1[%c0_7, %c0_8] : memref<1x32xf32, #tpu.memory_space<vmem>>, vector<1x32xf32>
    %20 = arith.mulf %19, %18 : vector<1x32xf32>
    %c0_9 = arith.constant 0 : index
    %c0_10 = arith.constant 0 : index
    %21 = vector.load %arg2[%c0_9, %c0_10] : memref<1x32xf32, #tpu.memory_space<vmem>>, vector<1x32xf32>
    %22 = arith.mulf %9, %20 : vector<1x32xf32>
    %23 = arith.subf %21, %22 : vector<1x32xf32>
    %24 = vector.broadcast %20 : vector<1x32xf32> to vector<8x32xf32>
    %25 = arith.mulf %2, %24 : vector<8x32xf32>
    %26 = vector.broadcast %23 : vector<1x32xf32> to vector<8x32xf32>
    %27 = arith.addf %25, %26 : vector<8x32xf32>
    %c0_11 = arith.constant 0 : index
    %c0_12 = arith.constant 0 : index
    %28 = vector.load %arg3[%c0_11, %c0_12] : memref<16x32xf32, #tpu.memory_space<vmem>>, vector<16x32xf32>
    %cst_13 = arith.constant dense<0.000000e+00> : vector<8x16xf32>
    %29 = tpu.matmul %27, %28, %cst_13 {dimension_numbers = #tpu.dot_dimension_numbers<[1], [1], [0], [0], [0, 0, 1, 0], [], []>} : vector<8x32xf32>, vector<16x32xf32>, vector<8x16xf32> -> vector<8x16xf32>
    %c0_14 = arith.constant 0 : index
    %c0_15 = arith.constant 0 : index
    %30 = vector.load %arg4[%c0_14, %c0_15] : memref<1x16xf32, #tpu.memory_space<vmem>>, vector<1x16xf32>
    %31 = vector.broadcast %30 : vector<1x16xf32> to vector<8x16xf32>
    %32 = arith.addf %29, %31 : vector<8x16xf32>
    %c0_16 = arith.constant 0 : index
    %c0_17 = arith.constant 0 : index
    %33 = vector.load %arg5[%c0_16, %c0_17] : memref<8x16xf32, #tpu.memory_space<vmem>>, vector<8x16xf32>
    tpu.vector_store %arg5[%c0_16, %c0_17], %32 {strides = array<i32>} : memref<8x16xf32, #tpu.memory_space<vmem>>, vector<8x16xf32>,
    return
  }
}

</mosaic_0001>

<llo_original>
// kernel: tpu_custom_call.1
$region0: #{tpu_custom_call.1}
  #allocation0 [shape = 'u32[]', space=smem, size = 0x4, offset = 0x4, fixed_abs, tag = 'smem constant byte address 0x4 - core index']
  #allocation1 [shape = 'u32[144,128]{1,0:T(1,128)}', space=vmem, size = 0x12000, scoped, tag = 'internal scratch']
  %s0 = inlined_call_operand.hbm [shape: f32[8,32], index: 0, kind: input, shape index: {}]
  %s1 = inlined_call_operand.vmem [shape: f32[1,32], index: 1, kind: input, shape index: {}]
  %s2 = inlined_call_operand.vmem [shape: f32[1,32], index: 2, kind: input, shape index: {}]
  %s3 = inlined_call_operand.hbm [shape: f32[16,32], index: 3, kind: input, shape index: {}]
  %s4 = inlined_call_operand.vmem [shape: f32[1,16], index: 4, kind: input, shape index: {}]
  %s5 = inlined_call_operand.hbm [shape: f32[8,16], index: 5, kind: output, shape index: {}]
  %s6 = sld [smem:[#allocation0]]
  $region38: #{tpu_custom_call.1} parent=0
    _
  %s8 = ssub.s32 1, %s6
  %s9 = scalar_select 0, %s8, %s6
  $region1: #{tpu_custom_call.1} parent=0
    #allocation2 [shape = 'u8[4096]{0}', space=vmem, size = 0x1000, scoped, tag = 'input window, operand 0, single buffered']
    #allocation3 [shape = 's32[1]{0}', space=sflag, size = 0x4, scoped, tag = 'scoped memory for tpu_custom_call.1']
    #allocation4 [shape = 's32[1]{0}', space=sflag, size = 0x4, scoped, tag = 'scoped memory for tpu_custom_call.1']
    #allocation5 [shape = 'u8[8192]{0}', space=vmem, size = 0x2000, scoped, tag = 'input window, operand 3, single buffered']
    #allocation6 [shape = 's32[1]{0}', space=sflag, size = 0x4, scoped, tag = 'scoped memory for tpu_custom_call.1']
    #allocation7 [shape = 'u8[4096]{0}', space=vmem, size = 0x1000, scoped, tag = 'output window, operand 0, single buffered']
    %10 = vsyncpa [#allocation3], 0
    %11 = vsyncpa [#allocation6], 0
    %12 = vsyncpa [#allocation4], 0
    // Predicated region
    $region2: #{tpu_custom_call.1} parent=1 // pred_check
      _
    $region3: #{tpu_custom_call.1} parent=1 // pred_check_branch
      %14 = sbr.rel (0) target = $region5
    $region4: #{tpu_custom_call.1} parent=1 // pred_region
      %s16 = ssub.s32 128, 128
      %17 = vsyncadd [#allocation3], %s16
      %s19 = sshll.u32 [#allocation2], 4
      %s20 = int_to_ptr.vmem [resolvable:$true] %s19
      %22 = dma.hbm_to_vmem [thread:$0]  %s0, 128, %s20, [#allocation3]
    $region5: #{tpu_custom_call.1} parent=1 // pred_fallthru
      _
    // Predicated region
    $region6: #{tpu_custom_call.1} parent=1 // pred_check
      _
    $region7: #{tpu_custom_call.1} parent=1 // pred_check_branch
      %24 = sbr.rel (0) target = $region9
    $region8: #{tpu_custom_call.1} parent=1 // pred_region
      _
    $region9: #{tpu_custom_call.1} parent=1 // pred_fallthru
      _
    // Predicated region
    $region10: #{tpu_custom_call.1} parent=1 // pred_check
      _
    $region11: #{tpu_custom_call.1} parent=1 // pred_check_branch
      %26 = sbr.rel (0) target = $region13
    $region12: #{tpu_custom_call.1} parent=1 // pred_region
      _
    $region13: #{tpu_custom_call.1} parent=1 // pred_fallthru
      _
    // Predicated region
    $region14: #{tpu_custom_call.1} parent=1 // pred_check
      _
    $region15: #{tpu_custom_call.1} parent=1 // pred_check_branch
      %28 = sbr.rel (0) target = $region17
    $region16: #{tpu_custom_call.1} parent=1 // pred_region
      %s30 = ssub.s32 256, 256
      %31 = vsyncadd [#allocation6], %s30
      %s32 = sshll.u32 [#allocation5], 4
      %s33 = int_to_ptr.vmem [resolvable:$true] %s32
      %38 = dma.hbm_to_vmem [thread:$0]  %s3, 256, %s33, [#allocation6], 128, 128, 8
    $region17: #{tpu_custom_call.1} parent=1 // pred_fallthru
      _
    // Predicated region
    $region18: #{tpu_custom_call.1} parent=1 // pred_check
      _
    $region19: #{tpu_custom_call.1} parent=1 // pred_check_branch
      %40 = sbr.rel (0) target = $region21
    $region20: #{tpu_custom_call.1} parent=1 // pred_region
      _
    $region21: #{tpu_custom_call.1} parent=1 // pred_fallthru
      _
    // Predicated region
    $region22: #{tpu_custom_call.1} parent=1 // pred_check
      _
    $region23: #{tpu_custom_call.1} parent=1 // pred_check_branch
      %42 = sbr.rel (0) target = $region25
    $region24: #{tpu_custom_call.1} parent=1 // pred_region
      %43 = dma.done [#allocation3], 128
    $region25: #{tpu_custom_call.1} parent=1 // pred_fallthru
      _
    // Predicated region
    $region26: #{tpu_custom_call.1} parent=1 // pred_check
      _
    $region27: #{tpu_custom_call.1} parent=1 // pred_check_branch
      %45 = sbr.rel (0) target = $region29
    $region28: #{tpu_custom_call.1} parent=1 // pred_region
      %46 = dma.done [#allocation6], 256
    $region29: #{tpu_custom_call.1} parent=1 // pred_fallthru
      _
    %v47 = vld [vmem:[#allocation2] sm:$0xff]
    %v48 = vmax.f32 %v47, 0.0
    %vm49 = vcmask 261120
    %v50 = vsel %vm49, %v48, 0.0
    %v51 = vrot.slane %v50, 4
    %v52 = vadd.f32 %v50, %v51
    %v53 = vrot.slane %v52, 2
    %v54 = vadd.f32 %v52, %v53
    %v55 = vrot.slane %v54, 1
    %v56 = vadd.f32 %v54, %v55
    %v57 = vmul.f32 %v48, %v48
    %v58 = vsel %vm49, %v57, 0.0
    %v59 = vrot.slane %v58, 4
    %v60 = vadd.f32 %v58, %v59
    %v61 = vrot.slane %v60, 2
    %v62 = vadd.f32 %v60, %v61
    %v63 = vrot.slane %v62, 1
    %v64 = vadd.f32 %v62, %v63
    %v65 = vmul.f32 %v56, 0.125
    %v66 = vmul.f32 %v64, 0.125
    %v67 = vmul.f32 %v65, %v65
    %v68 = vsub.f32 %v66, %v67
    %v69 = vmax.f32 %v68, 0.0
    %v70 = vadd.f32 %v69, 1e-05
    %v71 = vrsqrt.pop %v70
    %v72 = vld [vmem:[%s1] sm:$0x1]
    %v73 = vmul.f32 %v72, %v71
    %v74 = vld [vmem:[%s2] sm:$0x1]
    %v75 = vmul.f32 %v65, %v73
    %v76 = vsub.f32 %v74, %v75
    %v78 = vlaneseq
    %v79 = vshrl.u32 %v78, 7
    %v80 = vsub.s32 0, %v79
    %v81 = vrot.slane %v73, %v80
    %v83 = vmul.f32 %v48, %v81
    %v85 = vlaneseq
    %v86 = vshrl.u32 %v85, 7
    %v87 = vsub.s32 0, %v86
    %v88 = vrot.slane %v76, %v87
    %v90 = vadd.f32 %v83, %v88
    %v91 = vld [vmem:[#allocation5] sm:$0xff]
    %v92 = vld [vmem:[#allocation5 + $0x8] sm:$0xff]
    %v93 = vld [vmem:[%s4] sm:$0x1]
    %v95 = vlaneseq
    %v96 = vshrl.u32 %v95, 7
    %v97 = vsub.s32 0, %v96
    %v98 = vrot.slane %v93, %v97
    %v101 = vsel %vm49, %v90, 0
    %v104 = vsel %vm49, %v91, 0
    %v107 = vsel %vm49, %v92, 0
    %109 = vmatprep.subr.mxu0 0.0
    %110 = vmatpush1.xpose.msra.mxu0 %v104
    %111 = vmatprep.subr.mxu0 0.0
    %112 = vmatpush1.xpose.msra.mxu0 %v107
    %113 = vmatprep.subr.mxu0 0.0
    %114 = vmatpush1.xpose.msra.mxu0 0.0
    %115 = vmatprep.subr.mxu0 0.0
    %116 = vmatpush1.xpose.msra.mxu0 0.0
    %117 = vmatprep.subr.mxu0 0.0
    %118 = vmatpush1.xpose.msra.mxu0 0.0
    %119 = vmatprep.subr.mxu0 0.0
    %120 = vmatpush1.xpose.msra.mxu0 0.0
    %121 = vmatprep.subr.mxu0 0.0
    %122 = vmatpush1.xpose.msra.mxu0 0.0
    %123 = vmatprep.subr.mxu0 0.0
    %124 = vmatpush1.xpose.msra.mxu0 0.0
    %125 = vmatprep.subr.mxu0 0.0
    %126 = vmatpush1.xpose.msra.mxu0 0.0
    %127 = vmatprep.subr.mxu0 0.0
    %128 = vmatpush1.xpose.msra.mxu0 0.0
    %129 = vmatprep.subr.mxu0 0.0
    %130 = vmatpush1.xpose.msra.mxu0 0.0
    %131 = vmatprep.subr.mxu0 0.0
    %132 = vmatpush1.xpose.msra.mxu0 0.0
    %133 = vmatprep.subr.mxu0 0.0
    %134 = vmatpush1.xpose.msra.mxu0 0.0
    %135 = vmatprep.subr.mxu0 0.0
    %136 = vmatpush1.xpose.msra.mxu0 0.0
    %137 = vmatprep.subr.mxu0 0.0
    %138 = vmatpush1.xpose.msra.mxu0 0.0
    %139 = vmatprep.subr.mxu0 0.0
    %140 = vmatpush1.xpose.msra.mxu0 0.0
    %141 = vmatprep.subr.mxu0 0.0
    %142 = vmatpush1.xpose.msra.mxu0 0.0
    %143 = vmatprep.subr.mxu0 0.0
    %144 = vmatpush1.xpose.msra.mxu0 0.0
    %145 = vmatprep.subr.mxu0 0.0
    %146 = vmatpush1.xpose.msra.mxu0 0.0
    %147 = vmatprep.subr.mxu0 0.0
    %148 = vmatpush1.xpose.msra.mxu0 0.0
    %149 = vmatprep.subr.mxu0 0.0
    %150 = vmatpush1.xpose.msra.mxu0 0.0
    %151 = vmatprep.subr.mxu0 0.0
    %152 = vmatpush1.xpose.msra.mxu0 0.0
    %153 = vmatprep.subr.mxu0 0.0
    %154 = vmatpush1.xpose.msra.mxu0 0.0
    %155 = vmatprep.subr.mxu0 0.0
    %156 = vmatpush1.xpose.msra.mxu0 0.0
    %157 = vmatprep.subr.mxu0 0.0
    %158 = vmatpush1.xpose.msra.mxu0 0.0
    %159 = vmatprep.subr.mxu0 0.0
    %160 = vmatpush1.xpose.msra.mxu0 0.0
    %161 = vmatprep.subr.mxu0 0.0
    %162 = vmatpush1.xpose.msra.mxu0 0.0
    %163 = vmatprep.subr.mxu0 0.0
    %164 = vmatpush1.xpose.msra.mxu0 0.0
    %165 = vmatprep.subr.mxu0 0.0
    %166 = vmatpush1.xpose.msra.mxu0 0.0
    %167 = vmatprep.subr.mxu0 0.0
    %168 = vmatpush1.xpose.msra.mxu0 0.0
    %169 = vmatprep.subr.mxu0 0.0
    %170 = vmatpush1.xpose.msra.mxu0 0.0
    %171 = vmatprep.subr.mxu0 0.0
    %172 = vmatpush1.xpose.msra.mxu0 0.0
    %173 = vmatprep.mubr.f32.mxu0 0.0
    %174 = vmatmul.mubr.f32.gmra.mrb[0].mxu0 %v101
    %v175 = vpop.f32.mrb[0].mxu0
    %v176 = vadd.f32 %v98, %v175
    %v177 = vpop.f32.mrb[0].mxu0
    %178 = vdwg.mxu0
    %vm179 = vcmask 130048
    %180 = vst.msk [vmem:[#allocation7] sm:$0xff] %vm179, %v176
    // Predicated region
    $region30: #{tpu_custom_call.1} parent=1 // pred_check
      _
    $region31: #{tpu_custom_call.1} parent=1 // pred_check_branch
      %182 = sbr.rel (0) target = $region33
    $region32: #{tpu_custom_call.1} parent=1 // pred_region
      %s184 = ssub.s32 128, 128
      %185 = vsyncadd [#allocation4], %s184
      %s187 = sshll.u32 [#allocation7], 4
      %s188 = int_to_ptr.vmem [resolvable:$true] %s187
      %190 = dma.vmem_to_hbm [thread:$0]  %s188, 128, %s5, [#allocation4]
    $region33: #{tpu_custom_call.1} parent=1 // pred_fallthru
      _
    // Predicated region
    $region34: #{tpu_custom_call.1} parent=1 // pred_check
      _
    $region35: #{tpu_custom_call.1} parent=1 // pred_check_branch
      %192 = sbr.rel (0) target = $region37
    $region36: #{tpu_custom_call.1} parent=1 // pred_region
      %193 = dma.done [#allocation4], 128
    $region37: #{tpu_custom_call.1} parent=1 // pred_fallthru
      _
    %194 = vsyncpa [#allocation3], 1
    %195 = vsyncpa [#allocation6], 1
    %196 = vsyncpa [#allocation4], 1

</llo_original>
